<compile_context>
chip_gen: v6e
topology: v6e:2x2x1
jax: 0.10.0
libtpu: 0.0.40
codegen_flags: <defaults>
</compile_context>

<pallas_src>
import math
from functools import partial

import jax
import jax.numpy as jnp
from jax import lax
from jax.experimental import pallas as pl
from jax.experimental.pallas import tpu as pltpu


def _nn_classifier_kernel(x_ref, protoT_ref, scale_ref, out_ref, *, matmul_dtype=None):
    # x_ref: (TB, Dp)  native dtype
    # protoT_ref: (Dp, Cp)  native dtype, resident across the grid
    # scale_ref: (1, Cp) f32 = temp / max(||proto_c||, 1e-12), resident
    # out_ref: (TB, Cp) f32
    x = x_ref[...]

    # Row norms in f32 (EUP rsqrt). F.normalize uses eps=1e-12 on the norm;
    # max(sumsq, eps^2) under rsqrt is mathematically identical.
    xf = x.astype(jnp.float32)
    inv_x = lax.rsqrt(
        jnp.maximum(jnp.sum(xf * xf, axis=-1, keepdims=True), jnp.float32(1e-24))
    )  # (TB, 1)

    a = x if matmul_dtype is None else x.astype(matmul_dtype)
    b = protoT_ref[...] if matmul_dtype is None else protoT_ref[...].astype(matmul_dtype)

    # Canonical (M,K) x (K,N) contraction on the MXU, f32 accumulator.
    raw = jnp.dot(a, b, preferred_element_type=jnp.float32)  # (TB, Cp)

    # Post-matmul scaling: per-row (temp-free) rsqrt scale, per-class scale
    # with temp folded in (computed once in the wrapper).
    out_ref[...] = raw * inv_x * scale_ref[...]


def _round_up(v, m):
    return ((v + m - 1) // m) * m


def _vmem_budget():
    """(tile-picking budget, scoped vmem limit) in bytes, generation-aware."""
    cap = 64 * 1024 * 1024  # conservative default (v7x per-core VMEM)
    try:
        info = pltpu.get_tpu_info()
        cap = int(getattr(info, "vmem_capacity_bytes", cap))
    except Exception:
        pass
    budget = max(min((cap * 2) // 5, 48 * 1024 * 1024), 8 * 1024 * 1024)
    limit = max(min((cap * 3) // 5, 96 * 1024 * 1024), budget + 4 * 1024 * 1024)
    return int(budget), int(limit)


def _pick_batch_tile(B, Dp, Cp, in_itemsize, budget_bytes):
    """Batch tile: multiple of 8, capped at 512, fits the VMEM budget."""
    b8 = _round_up(B, 8)
    tb = min(512, b8)
    # v7x has 2 TensorCores: when the whole batch fits one 512-row tile but is
    # large enough, split into 2 grid steps so the "parallel" axis can shard.
    if pl.cdiv(B, tb) == 1 and b8 >= 512:
        tb = _round_up(pl.cdiv(b8, 2), 8)

    def fits(t):
        x_buf = 2 * t * Dp * in_itemsize                 # double-buffered x tiles
        x_f32 = t * Dp * 4 if in_itemsize < 4 else 0     # in-kernel f32 cast temp
        out_buf = 2 * t * Cp * 4                         # double-buffered f32 out
        raw_tmp = t * Cp * 4                             # f32 matmul result temp
        proto = 2 * Cp * Dp * in_itemsize                # resident proto (conservative 2x)
        scale = 2 * Cp * 4
        return x_buf + x_f32 + out_buf + raw_tmp + proto + scale <= budget_bytes

    while tb > 8 and not fits(tb):
        tb = max(8, _round_up(tb // 2, 8))
    # NOTE: for huge Cp*Dp (proto block alone near the budget) a second grid
    # axis over C would be needed; class counts for this module are small.
    return tb


def nn_classifier_forward(x, proto, temp, *, matmul_dtype=None):
    """x: (B, D), proto: (C, D), temp: scalar -> logits (B, C) in f32."""
    B, D = x.shape
    C, _ = proto.shape

    Dp = _round_up(D, 128)
    Cp = _round_up(C, 128)

    # --- hoisted prototype normalization (once, outside the kernel) ---------
    pf = proto.astype(jnp.float32)
    p_norm = jnp.sqrt(jnp.sum(pf * pf, axis=-1))  # (C,)
    scale = jnp.asarray(temp, jnp.float32) / jnp.maximum(p_norm, jnp.float32(1e-12))
    if Cp != C:
        scale_p = jnp.zeros((1, Cp), jnp.float32).at[0, :C].set(scale)
    else:
        scale_p = scale[None, :]

    # --- proto pre-transposed to (Dp, Cp); zero padding preserves dot/norms --
    if Dp != D or Cp != C:
        proto_t = jnp.zeros((Dp, Cp), proto.dtype).at[:D, :C].set(proto.T)
    else:
        proto_t = proto.T

    # --- x: pad the feature dim only if needed; never pad the batch dim -----
    x_in = x if Dp == D else jnp.zeros((B, Dp), x.dtype).at[:, :D].set(x)

    budget, vmem_limit = _vmem_budget()
    TB = _pick_batch_tile(B, Dp, Cp, jnp.dtype(x.dtype).itemsize, budget)

    kernel = partial(_nn_classifier_kernel, matmul_dtype=matmul_dtype)

    out = pl.pallas_call(
        kernel,
        out_shape=jax.ShapeDtypeStruct((B, Cp), jnp.float32),
        grid=(pl.cdiv(B, TB),),
        in_specs=[
            pl.BlockSpec((TB, Dp), lambda i: (i, 0)),   # x batch tile (pipelined)
            pl.BlockSpec((Dp, Cp), lambda i: (0, 0)),   # proto^T, resident
            pl.BlockSpec((1, Cp), lambda i: (0, 0)),    # per-class scale, resident
        ],
        out_specs=pl.BlockSpec((TB, Cp), lambda i: (i, 0)),
        compiler_params=pltpu.CompilerParams(
            dimension_semantics=("parallel",),
            vmem_limit_bytes=vmem_limit,
        ),
    )(x_in, proto_t, scale_p)

    return out if Cp == C else out[:, :C]


if __name__ == "__main__":
    # Small shapes consistent with the module: batch=8 feature vectors of
    # in_dim=32, n_classes=8 prototypes.
    B, in_dim, n_classes = 8, 32, 8

    key = jax.random.PRNGKey(0)
    kx, kp = jax.random.split(key)

    x = jax.random.normal(kx, (B, in_dim), dtype=jnp.float32)

    # Deterministic kaiming_uniform_(a=sqrt(5)) init for proto:
    #   gain = sqrt(2 / (1 + a^2)) = sqrt(1/3);  bound = gain * sqrt(3 / fan_in)
    fan_in = in_dim
    bound = math.sqrt(1.0 / 3.0) * math.sqrt(3.0 / fan_in)
    proto = jax.random.uniform(
        kp, (n_classes, in_dim), minval=-bound, maxval=bound, dtype=jnp.float32
    )

    temp = 10.0  # metric='cos' default -> learnable temp initialized to 10.0

    logits = nn_classifier_forward(x, proto, temp)
    jax.block_until_ready(logits)

    # Sanity check against a plain-JAX reference (F.normalize semantics).
    def ref(x, proto, temp):
        xn = x / jnp.maximum(jnp.linalg.norm(x, axis=-1, keepdims=True), 1e-12)
        pn = proto / jnp.maximum(
            jnp.linalg.norm(proto, axis=-1, keepdims=True), 1e-12
        )
        return (xn @ pn.T) * temp

    expected = ref(x, proto, temp)
    assert logits.shape == (B, n_classes)
    assert jnp.allclose(logits, expected, atol=1e-4, rtol=1e-4)

    print("KERNEL_OK")
</pallas_src>

<mosaic_0001>
module attributes {stable_mosaic.version = 11 : i64} {
  func.func @_nn_classifier_kernel(%arg0: i32, %arg1: memref<8x128xf32, #tpu.memory_space<vmem>>, %arg2: memref<128x128xf32, #tpu.memory_space<vmem>>, %arg3: memref<1x128xf32, #tpu.memory_space<vmem>>, %arg4: memref<8x128xf32, #tpu.memory_space<vmem>>) attributes {dimension_semantics = [#tpu.dimension_semantics<parallel>], iteration_bounds = array<i64: 1>, scalar_prefetch = 0 : i64, scratch_operands = 0 : i64, tpu.core_type = #tpu.core_type<tc>, window_params = [{transform_indices = @transform_0, window_bounds = array<i64: 8, 128>}, {pipeline_mode = #tpu.pipeline_mode<synchronous>, transform_indices = @transform_1, window_bounds = array<i64: 128, 128>}, {pipeline_mode = #tpu.pipeline_mode<synchronous>, transform_indices = @transform_2, window_bounds = array<i64: 1, 128>}, {transform_indices = @transform_3, window_bounds = array<i64: 8, 128>}]} {
    %c0 = arith.constant 0 : index
    %c0_0 = arith.constant 0 : index
    %0 = vector.load %arg1[%c0, %c0_0] : memref<8x128xf32, #tpu.memory_space<vmem>>, vector<8x128xf32>
    %1 = arith.mulf %0, %0 : vector<8x128xf32>
    %cst = arith.constant dense<0.000000e+00> : vector<8xf32>
    %2 = vector.multi_reduction <add>, %1, %cst [1] : vector<8x128xf32> to vector<8xf32>
    %3 = vector.shape_cast %2 : vector<8xf32> to vector<8x1xf32>
    %cst_1 = arith.constant 1.000000e-24 : f32
    %4 = vector.broadcast %cst_1 : f32 to vector<8x1xf32>
    %5 = arith.maximumf %3, %4 : vector<8x1xf32>
    %6 = math.rsqrt %5 : vector<8x1xf32>
    %c0_2 = arith.constant 0 : index
    %c0_3 = arith.constant 0 : index
    %7 = vector.load %arg2[%c0_2, %c0_3] : memref<128x128xf32, #tpu.memory_space<vmem>>, vector<128x128xf32>
    %cst_4 = arith.constant dense<0.000000e+00> : vector<8x128xf32>
    %8 = tpu.matmul %0, %7, %cst_4 {dimension_numbers = #tpu.dot_dimension_numbers<[1], [0], [0], [1], [0, 0, 1, 1], [], []>} : vector<8x128xf32>, vector<128x128xf32>, vector<8x128xf32> -> vector<8x128xf32>
    %9 = vector.broadcast %6 : vector<8x1xf32> to vector<8x128xf32>
    %10 = arith.mulf %8, %9 : vector<8x128xf32>
    %c0_5 = arith.constant 0 : index
    %c0_6 = arith.constant 0 : index
    %11 = vector.load %arg3[%c0_5, %c0_6] : memref<1x128xf32, #tpu.memory_space<vmem>>, vector<1x128xf32>
    %12 = vector.broadcast %11 : vector<1x128xf32> to vector<8x128xf32>
    %13 = arith.mulf %10, %12 : vector<8x128xf32>
    %c0_7 = arith.constant 0 : index
    %c0_8 = arith.constant 0 : index
    %14 = vector.load %arg4[%c0_7, %c0_8] : memref<8x128xf32, #tpu.memory_space<vmem>>, vector<8x128xf32>
    tpu.vector_store %arg4[%c0_7, %c0_8], %13 {strides = array<i32>} : memref<8x128xf32, #tpu.memory_space<vmem>>, vector<8x128xf32>,
    return
  }
  func.func @transform_0(%arg0: i32) -> (i32, i32) {
    %c0_i32 = arith.constant 0 : i32
    %c0_i32_0 = arith.constant 0 : i32
    return %arg0, %c0_i32 : i32, i32
  }
  func.func @transform_1(%arg0: i32) -> (i32, i32) {
    %c0_i32 = arith.constant 0 : i32
    %c0_i32_0 = arith.constant 0 : i32
    %c0_i32_1 = arith.constant 0 : i32
    return %c0_i32, %c0_i32_0 : i32, i32
  }
  func.func @transform_2(%arg0: i32) -> (i32, i32) {
    %c0_i32 = arith.constant 0 : i32
    %c0_i32_0 = arith.constant 0 : i32
    %c0_i32_1 = arith.constant 0 : i32
    return %c0_i32, %c0_i32_0 : i32, i32
  }
  func.func @transform_3(%arg0: i32) -> (i32, i32) {
    %c0_i32 = arith.constant 0 : i32
    %c0_i32_0 = arith.constant 0 : i32
    return %arg0, %c0_i32 : i32, i32
  }
}

</mosaic_0001>

<llo_original>
// kernel: tpu_custom_call.1
$region0: #{tpu_custom_call.1}
  #allocation0 [shape = 'u32[]', space=smem, size = 0x4, offset = 0x4, fixed_abs, tag = 'smem constant byte address 0x4 - core index']
  #allocation1 [shape = 'u32[144,128]{1,0:T(1,128)}', space=vmem, size = 0x12000, scoped, tag = 'internal scratch']
  %s0 = inlined_call_operand.hbm [shape: f32[8,128], index: 0, kind: input, shape index: {}]
  %s1 = inlined_call_operand.hbm [shape: f32[128,128], index: 1, kind: input, shape index: {}]
  %s2 = inlined_call_operand.vmem [shape: f32[1,128], index: 2, kind: input, shape index: {}]
  %s3 = inlined_call_operand.hbm [shape: f32[8,128], index: 3, kind: output, shape index: {}]
  %s4 = sld [smem:[#allocation0]]
  $region30: #{tpu_custom_call.1} parent=0
    _
  %s6 = ssub.s32 1, %s4
  %s7 = scalar_select 0, %s6, %s4
  $region1: #{tpu_custom_call.1} parent=0
    #allocation2 [shape = 'u8[4096]{0}', space=vmem, size = 0x1000, scoped, tag = 'input window, operand 0, single buffered']
    #allocation3 [shape = 's32[1]{0}', space=sflag, size = 0x4, scoped, tag = 'scoped memory for tpu_custom_call.1']
    #allocation4 [shape = 's32[1]{0}', space=sflag, size = 0x4, scoped, tag = 'scoped memory for tpu_custom_call.1']
    #allocation5 [shape = 'u8[65536]{0}', space=vmem, size = 0x10000, scoped, tag = 'input window, operand 1, single buffered']
    #allocation6 [shape = 's32[1]{0}', space=sflag, size = 0x4, scoped, tag = 'scoped memory for tpu_custom_call.1']
    #allocation7 [shape = 'u8[4096]{0}', space=vmem, size = 0x1000, scoped, tag = 'output window, operand 0, single buffered']
    %8 = vsyncpa [#allocation3], 0
    %9 = vsyncpa [#allocation6], 0
    %10 = vsyncpa [#allocation4], 0
    // Predicated region
    $region2: #{tpu_custom_call.1} parent=1 // pred_check
      _
    $region3: #{tpu_custom_call.1} parent=1 // pred_check_branch
      %12 = sbr.rel (0) target = $region5
    $region4: #{tpu_custom_call.1} parent=1 // pred_region
      %s14 = ssub.s32 128, 128
      %15 = vsyncadd [#allocation3], %s14
      %s17 = sshll.u32 [#allocation2], 4
      %s18 = int_to_ptr.vmem [resolvable:$true] %s17
      %20 = dma.hbm_to_vmem [thread:$0]  %s0, 128, %s18, [#allocation3]
    $region5: #{tpu_custom_call.1} parent=1 // pred_fallthru
      _
    // Predicated region
    $region6: #{tpu_custom_call.1} parent=1 // pred_check
      _
    $region7: #{tpu_custom_call.1} parent=1 // pred_check_branch
      %22 = sbr.rel (0) target = $region9
    $region8: #{tpu_custom_call.1} parent=1 // pred_region
      %s24 = ssub.s32 2048, 2048
      %25 = vsyncadd [#allocation6], %s24
      %s26 = sshll.u32 [#allocation5], 4
      %s27 = int_to_ptr.vmem [resolvable:$true] %s26
      %32 = dma.hbm_to_vmem [thread:$0]  %s1, 2048, %s27, [#allocation6], 128, 128, 8
    $region9: #{tpu_custom_call.1} parent=1 // pred_fallthru
      _
    // Predicated region
    $region10: #{tpu_custom_call.1} parent=1 // pred_check
      _
    $region11: #{tpu_custom_call.1} parent=1 // pred_check_branch
      %34 = sbr.rel (0) target = $region13
    $region12: #{tpu_custom_call.1} parent=1 // pred_region
      _
    $region13: #{tpu_custom_call.1} parent=1 // pred_fallthru
      _
    // Predicated region
    $region14: #{tpu_custom_call.1} parent=1 // pred_check
      _
    $region15: #{tpu_custom_call.1} parent=1 // pred_check_branch
      %36 = sbr.rel (0) target = $region17
    $region16: #{tpu_custom_call.1} parent=1 // pred_region
      %37 = dma.done [#allocation3], 128
    $region17: #{tpu_custom_call.1} parent=1 // pred_fallthru
      _
    // Predicated region
    $region18: #{tpu_custom_call.1} parent=1 // pred_check
      _
    $region19: #{tpu_custom_call.1} parent=1 // pred_check_branch
      %39 = sbr.rel (0) target = $region21
    $region20: #{tpu_custom_call.1} parent=1 // pred_region
      %40 = dma.done [#allocation6], 2048
    $region21: #{tpu_custom_call.1} parent=1 // pred_fallthru
      _
    %v41 = vld [vmem:[#allocation2] sm:$0xff]
    %v42 = vmul.f32 %v41, %v41
    %43 = vadd.xlane.f32.xlu0 %v42
    %v44 = vpop.xlane.xlu0 %43
    %v45 = vmax.f32 %v44, 1e-24
    %v46 = vrsqrt.pop %v45
    %v47 = vld [vmem:[#allocation5] sm:$0xff]
    %v48 = vld [vmem:[#allocation5 + $0x8] sm:$0xff]
    %v49 = vld [vmem:[#allocation5 + $0x10] sm:$0xff]
    %v50 = vld [vmem:[#allocation5 + $0x18] sm:$0xff]
    %v51 = vld [vmem:[#allocation5 + $0x20] sm:$0xff]
    %v52 = vld [vmem:[#allocation5 + $0x28] sm:$0xff]
    %v53 = vld [vmem:[#allocation5 + $0x30] sm:$0xff]
    %v54 = vld [vmem:[#allocation5 + $0x38] sm:$0xff]
    %v55 = vld [vmem:[#allocation5 + $0x40] sm:$0xff]
    %v56 = vld [vmem:[#allocation5 + $0x48] sm:$0xff]
    %v57 = vld [vmem:[#allocation5 + $0x50] sm:$0xff]
    %v58 = vld [vmem:[#allocation5 + $0x58] sm:$0xff]
    %v59 = vld [vmem:[#allocation5 + $0x60] sm:$0xff]
    %v60 = vld [vmem:[#allocation5 + $0x68] sm:$0xff]
    %v61 = vld [vmem:[#allocation5 + $0x70] sm:$0xff]
    %v62 = vld [vmem:[#allocation5 + $0x78] sm:$0xff]
    %63 = vmatprep.subr.mxu0 0.0
    %64 = vmatpush1.msra.mxu0 %v62
    %65 = vmatprep.subr.mxu0 0.0
    %66 = vmatpush1.msra.mxu0 %v61
    %67 = vmatprep.subr.mxu0 0.0
    %68 = vmatpush1.msra.mxu0 %v60
    %69 = vmatprep.subr.mxu0 0.0
    %70 = vmatpush1.msra.mxu0 %v59
    %71 = vmatprep.subr.mxu0 0.0
    %72 = vmatpush1.msra.mxu0 %v58
    %73 = vmatprep.subr.mxu0 0.0
    %74 = vmatpush1.msra.mxu0 %v57
    %75 = vmatprep.subr.mxu0 0.0
    %76 = vmatpush1.msra.mxu0 %v56
    %77 = vmatprep.subr.mxu0 0.0
    %78 = vmatpush1.msra.mxu0 %v55
    %79 = vmatprep.subr.mxu0 0.0
    %80 = vmatpush1.msra.mxu0 %v54
    %81 = vmatprep.subr.mxu0 0.0
    %82 = vmatpush1.msra.mxu0 %v53
    %83 = vmatprep.subr.mxu0 0.0
    %84 = vmatpush1.msra.mxu0 %v52
    %85 = vmatprep.subr.mxu0 0.0
    %86 = vmatpush1.msra.mxu0 %v51
    %87 = vmatprep.subr.mxu0 0.0
    %88 = vmatpush1.msra.mxu0 %v50
    %89 = vmatprep.subr.mxu0 0.0
    %90 = vmatpush1.msra.mxu0 %v49
    %91 = vmatprep.subr.mxu0 0.0
    %92 = vmatpush1.msra.mxu0 %v48
    %93 = vmatprep.subr.mxu0 0.0
    %94 = vmatpush1.msra.mxu0 %v47
    %95 = vmatprep.subr.mxu0 0.0
    %96 = vmatpush2.msra.mxu0 0.0
    %97 = vmatprep.subr.mxu0 0.0
    %98 = vmatpush2.msra.mxu0 0.0
    %99 = vmatprep.subr.mxu0 0.0
    %100 = vmatpush2.msra.mxu0 0.0
    %101 = vmatprep.subr.mxu0 0.0
    %102 = vmatpush2.msra.mxu0 0.0
    %103 = vmatprep.subr.mxu0 0.0
    %104 = vmatpush2.msra.mxu0 0.0
    %105 = vmatprep.subr.mxu0 0.0
    %106 = vmatpush2.msra.mxu0 0.0
    %107 = vmatprep.subr.mxu0 0.0
    %108 = vmatpush2.msra.mxu0 0.0
    %109 = vmatprep.subr.mxu0 0.0
    %110 = vmatpush2.msra.mxu0 0.0
    %111 = vmatprep.subr.mxu0 0.0
    %112 = vmatpush2.msra.mxu0 0.0
    %113 = vmatprep.subr.mxu0 0.0
    %114 = vmatpush2.msra.mxu0 0.0
    %115 = vmatprep.subr.mxu0 0.0
    %116 = vmatpush2.msra.mxu0 0.0
    %117 = vmatprep.subr.mxu0 0.0
    %118 = vmatpush2.msra.mxu0 0.0
    %119 = vmatprep.subr.mxu0 0.0
    %120 = vmatpush2.msra.mxu0 0.0
    %121 = vmatprep.subr.mxu0 0.0
    %122 = vmatpush2.msra.mxu0 0.0
    %123 = vmatprep.subr.mxu0 0.0
    %124 = vmatpush2.msra.mxu0 0.0
    %125 = vmatprep.subr.mxu0 0.0
    %126 = vmatpush2.msra.mxu0 0.0
    %127 = vmatprep.mubr.f32.mxu0 0.0
    %128 = vmatmul.mubr.f32.gmra.mxu0 %v41
    %v129 = vpop.f32.mrf.mxu0
    %v130 = vadd.f32 0.0, %v129
    %v131 = vpop.f32.mrf.mxu0
    %132 = vdwg.mxu0
    %v133 = vmul.f32 %v130, %v46
    %v134 = vld [vmem:[%s2] sm:$0x1]
    %v136 = vlaneseq
    %v137 = vshrl.u32 %v136, 7
    %v138 = vsub.s32 0, %v137
    %v139 = vrot.slane %v134, %v138
    %v141 = vmul.f32 %v133, %v139
    %142 = vst [vmem:[#allocation7] sm:$0xff] %v141
    // Predicated region
    $region22: #{tpu_custom_call.1} parent=1 // pred_check
      _
    $region23: #{tpu_custom_call.1} parent=1 // pred_check_branch
      %144 = sbr.rel (0) target = $region25
    $region24: #{tpu_custom_call.1} parent=1 // pred_region
      %s146 = ssub.s32 128, 128
      %147 = vsyncadd [#allocation4], %s146
      %s149 = sshll.u32 [#allocation7], 4
      %s150 = int_to_ptr.vmem [resolvable:$true] %s149
      %152 = dma.vmem_to_hbm [thread:$0]  %s150, 128, %s3, [#allocation4]
    $region25: #{tpu_custom_call.1} parent=1 // pred_fallthru
      _
    // Predicated region
    $region26: #{tpu_custom_call.1} parent=1 // pred_check
      _
    $region27: #{tpu_custom_call.1} parent=1 // pred_check_branch
      %154 = sbr.rel (0) target = $region29
    $region28: #{tpu_custom_call.1} parent=1 // pred_region
      %155 = dma.done [#allocation4], 128
    $region29: #{tpu_custom_call.1} parent=1 // pred_fallthru
      _
    %156 = vsyncpa [#allocation3], 1
    %157 = vsyncpa [#allocation6], 1
    %158 = vsyncpa [#allocation4], 1

</llo_original>
